<compile_context>
chip_gen: v5e
topology: v5e:2x2
jax: 0.10.0
libtpu: 0.0.40
codegen_flags: <defaults>
</compile_context>

<pallas_src>
import functools

import jax
import jax.numpy as jnp
import numpy as np
from jax.experimental import pallas as pl
from jax.experimental.pallas import tpu as pltpu


# ---------------------------------------------------------------------------
# Generation-aware VMEM budgets.
# ---------------------------------------------------------------------------
def _vmem_budgets():
    cap = None
    try:
        info = pltpu.get_tpu_info()
        cap = getattr(info, "vmem_capacity_bytes", None)
    except Exception:
        cap = None
    if cap is None:
        cap = 64 * 1024 * 1024              # conservative: v7x physical VMEM
    if cap >= 128 * 1024 * 1024:            # v5e / v6e (128 MiB physical)
        in_budget = 16 * 1024 * 1024        # double-buffered input target
        vmem_limit = 64 * 1024 * 1024
    else:                                   # v7x-class (64 MiB physical)
        in_budget = 12 * 1024 * 1024
        vmem_limit = 40 * 1024 * 1024
    return in_budget, vmem_limit


def _sublane_align(*dtypes):
    # rows-per-sublane packing: f32 -> 8, bf16 -> 16, int8/fp8 -> 32
    return max(max(8, 32 // max(1, jnp.dtype(d).itemsize)) for d in dtypes)


def _pick_tile_rows(n_rows, bytes_per_row, align, in_budget, max_tile_rows=None):
    """Grow the row tile to fill the double-buffered VMEM input budget."""
    cap = in_budget // max(1, 2 * bytes_per_row)    # 2x: double buffering
    if max_tile_rows is not None:
        cap = min(cap, max_tile_rows)
    if cap >= n_rows:
        return n_rows                               # full dim: always legal
    tn = (cap // align) * align
    if tn == 0:
        tn = align
    return min(tn, n_rows)


# ---------------------------------------------------------------------------
# Kernels.  Each grid step writes its own (1, 8, 128) partial-sum block.
# ---------------------------------------------------------------------------
def _scalar_to_block(s):
    """Place scalar s at [0, 0] of an (8, 128) f32 block (zeros elsewhere)."""
    sub = jax.lax.broadcasted_iota(jnp.int32, (8, 128), 0)
    lane = jax.lax.broadcasted_iota(jnp.int32, (8, 128), 1)
    return jnp.where((sub == 0) & (lane == 0), s, 0.0)


def _elem_partial_kernel(x_ref, t_ref, o_ref, *, per_fn, n_rows, tile_rows,
                         mask_tail):
    """Elementwise losses (BCE / L1) on a lane-dense (TN, W) tile."""
    i = pl.program_id(0)
    x = x_ref[...].astype(jnp.float32)
    t = t_ref[...].astype(jnp.float32)
    per = per_fn(x, t)                                        # (TN, W) f32
    tn, w = per.shape
    if mask_tail:                                             # static check
        rows = i * tile_rows + jax.lax.broadcasted_iota(jnp.int32, (tn, 1), 0)
        per = jnp.where(rows < n_rows, per, 0.0)
    if tn % 8 == 0:
        # Fold sublane groups with pure VPU vreg adds -> (8, W); then fold the
        # 128-wide lane groups with tile-aligned slices -> (8, 128).
        part = per.reshape(tn // 8, 8, w).sum(axis=0)
        partial = part[:, 0:128]
        for g in range(1, w // 128):
            partial = partial + part[:, g * 128:(g + 1) * 128]
    else:
        # Tiny single-block case (tile == full row count, not 8-aligned).
        partial = _scalar_to_block(jnp.sum(per))
    o_ref[...] = partial[None, :, :]


def _ce_partial_kernel(x_ref, t_ref, o_ref, *, n_rows, tile_rows, mask_tail):
    """CrossEntropy on a (TN, C) logits tile with (TN, 1) int32 targets."""
    i = pl.program_id(0)
    x = x_ref[...].astype(jnp.float32)                        # (TN, C)
    t = t_ref[...]                                            # (TN, 1) int32
    tn, c = x.shape
    m = jnp.max(x, axis=-1, keepdims=True)
    lse = m + jnp.log(jnp.sum(jnp.exp(x - m), axis=-1, keepdims=True))
    ids = jax.lax.broadcasted_iota(jnp.int32, (tn, c), 1)
    tgt = jnp.sum(jnp.where(ids == t, x, 0.0), axis=-1, keepdims=True)
    per_row = lse - tgt                                       # (TN, 1)
    if mask_tail:                                             # static check
        rows = i * tile_rows + jax.lax.broadcasted_iota(jnp.int32, (tn, 1), 0)
        per_row = jnp.where(rows < n_rows, per_row, 0.0)
    o_ref[...] = _scalar_to_block(jnp.sum(per_row))[None, :, :]


def _bce_per(x, t):
    # PyTorch BCELoss clamps the log terms at -100 (handles exact 0/1 inputs).
    log_x = jnp.maximum(jnp.log(x), -100.0)
    log_1mx = jnp.maximum(jnp.log1p(-x), -100.0)
    return -(t * log_x + (1.0 - t) * log_1mx)


def _bce_hard_per(x, t):
    # Single-log variant, valid only for hard {0, 1} targets (halves EUP work).
    return -jnp.maximum(jnp.log(jnp.where(t > 0.5, x, 1.0 - x)), -100.0)


def _l1_per(x, t):
    return jnp.abs(x - t)


# ---------------------------------------------------------------------------
# Wrapper: layout / tiling decisions + pallas_call + tiny XLA epilogue.
# ---------------------------------------------------------------------------
def loss_flood(input_, target, *, flood_level, loss_name,
               bce_hard_targets=False, max_tile_rows=None):
    in_budget, vmem_limit = _vmem_budgets()

    if loss_name == "CrossEntropy":
        n, c = input_.shape
        tgt = target.astype(jnp.int32).reshape(n, 1)
        align = _sublane_align(input_.dtype, tgt.dtype)
        bytes_per_row = c * jnp.dtype(input_.dtype).itemsize + 4
        tn = _pick_tile_rows(n, bytes_per_row, align, in_budget, max_tile_rows)
        mask_tail = (n % tn) != 0
        kernel = functools.partial(_ce_partial_kernel, n_rows=n, tile_rows=tn,
                                   mask_tail=mask_tail)
        x2d, t2d = input_, tgt
        n_rows, w, t_cols, count = n, c, 1, n

    elif loss_name in ("BCELoss", "L1Loss"):
        if loss_name == "BCELoss":
            per_fn = _bce_hard_per if bce_hard_targets else _bce_per
        else:
            per_fn = _l1_per
        tgt = target
        # bf16 inputs: stream targets as bf16 too (halves target HBM bytes).
        if input_.dtype == jnp.bfloat16 and tgt.dtype == jnp.float32:
            tgt = tgt.astype(jnp.bfloat16)
        x_flat = input_.reshape(-1)
        t_flat = tgt.reshape(-1)
        count = x_flat.shape[0]                 # true element count for mean
        pad = (-count) % 128
        if pad:
            # Zero pads contribute exactly 0 to both BCE and L1 partial sums.
            x_flat = jnp.pad(x_flat, (0, pad))
            t_flat = jnp.pad(t_flat, (0, pad))
        e_pad = count + pad
        w = 128
        for cand in (1024, 512, 256):
            if e_pad % cand == 0:
                w = cand
                break
        n_rows = e_pad // w
        x2d = x_flat.reshape(n_rows, w)         # lane-dense, free reshape
        t2d = t_flat.reshape(n_rows, w)
        align = _sublane_align(x2d.dtype, t2d.dtype)
        bytes_per_row = w * (jnp.dtype(x2d.dtype).itemsize
                             + jnp.dtype(t2d.dtype).itemsize)
        tn = _pick_tile_rows(n_rows, bytes_per_row, align, in_budget,
                             max_tile_rows)
        mask_tail = (n_rows % tn) != 0
        kernel = functools.partial(_elem_partial_kernel, per_fn=per_fn,
                                   n_rows=n_rows, tile_rows=tn,
                                   mask_tail=mask_tail)
        t_cols = w
    else:
        raise ValueError("Unrecognized loss name.")

    num_tiles = pl.cdiv(n_rows, tn)
    partials = pl.pallas_call(
        kernel,
        grid=(num_tiles,),
        in_specs=[pl.BlockSpec((tn, w), lambda i: (i, 0)),
                  pl.BlockSpec((tn, t_cols), lambda i: (i, 0))],
        out_specs=pl.BlockSpec((1, 8, 128), lambda i: (i, 0, 0)),
        out_shape=jax.ShapeDtypeStruct((num_tiles, 8, 128), jnp.float32),
        compiler_params=pltpu.CompilerParams(
            dimension_semantics=("parallel",),
            vmem_limit_bytes=vmem_limit),
    )(x2d, t2d)

    # Tiny XLA epilogue: collapse partials, mean over true count, flooding.
    mean = jnp.sum(partials) / jnp.float32(count)
    fl = jnp.float32(flood_level)
    return jnp.abs(mean - fl) + fl


# ---------------------------------------------------------------------------
# Pure-JAX references (verification only).
# ---------------------------------------------------------------------------
def _flood(loss, fl):
    return jnp.abs(loss - fl) + fl


def _ce_ref(x, t, fl):
    x = x.astype(jnp.float32)
    lse = jax.scipy.special.logsumexp(x, axis=-1)
    tgt = jnp.take_along_axis(x, t[:, None].astype(jnp.int32), axis=-1)[:, 0]
    return _flood(jnp.mean(lse - tgt), fl)


def _bce_ref(x, t, fl):
    x = x.astype(jnp.float32)
    t = t.astype(jnp.float32)
    per = -(t * jnp.maximum(jnp.log(x), -100.0)
            + (1.0 - t) * jnp.maximum(jnp.log1p(-x), -100.0))
    return _flood(jnp.mean(per), fl)


def _l1_ref(x, t, fl):
    return _flood(jnp.mean(jnp.abs(x.astype(jnp.float32)
                                   - t.astype(jnp.float32))), fl)


if __name__ == "__main__":
    key = jax.random.PRNGKey(0)
    ks = jax.random.split(key, 8)
    fl = 0.1

    # --- CrossEntropy (40, 32): tiled path (tn=16 -> 3 tiles, masked tail) ---
    logits = jax.random.normal(ks[0], (40, 32), dtype=jnp.float32)
    labels = jax.random.randint(ks[1], (40,), 0, 32, dtype=jnp.int32)
    out = loss_flood(logits, labels, flood_level=fl, loss_name="CrossEntropy",
                     max_tile_rows=16)
    jax.block_until_ready(out)
    np.testing.assert_allclose(np.asarray(out),
                               np.asarray(_ce_ref(logits, labels, fl)),
                               rtol=1e-5, atol=1e-5)
    # single-tile path
    out = loss_flood(logits, labels, flood_level=fl, loss_name="CrossEntropy")
    np.testing.assert_allclose(np.asarray(out),
                               np.asarray(_ce_ref(logits, labels, fl)),
                               rtol=1e-5, atol=1e-5)

    # --- BCELoss (96, 40): E=3840 -> lane-dense (15, 256); tn=8, masked tail ---
    probs = jax.nn.sigmoid(jax.random.normal(ks[2], (96, 40), dtype=jnp.float32))
    bt = jax.random.bernoulli(ks[3], 0.5, (96, 40)).astype(jnp.float32)
    out = loss_flood(probs, bt, flood_level=fl, loss_name="BCELoss",
                     max_tile_rows=8)
    jax.block_until_ready(out)
    np.testing.assert_allclose(np.asarray(out),
                               np.asarray(_bce_ref(probs, bt, fl)),
                               rtol=1e-5, atol=1e-5)
    # hard-target single-log variant (same result for {0,1} targets)
    out = loss_flood(probs, bt, flood_level=fl, loss_name="BCELoss",
                     bce_hard_targets=True)
    np.testing.assert_allclose(np.asarray(out),
                               np.asarray(_bce_ref(probs, bt, fl)),
                               rtol=1e-5, atol=1e-5)

    # --- L1Loss (40, 33): ragged E=1320 -> zero-pad to 1408 -> (11, 128) ---
    x1 = jax.random.normal(ks[4], (40, 33), dtype=jnp.float32)
    t1 = jax.random.normal(ks[5], (40, 33), dtype=jnp.float32)
    out = loss_flood(x1, t1, flood_level=fl, loss_name="L1Loss")
    jax.block_until_ready(out)
    np.testing.assert_allclose(np.asarray(out),
                               np.asarray(_l1_ref(x1, t1, fl)),
                               rtol=1e-5, atol=1e-5)

    # --- L1Loss, bf16 inputs (f32 targets cast to bf16 in the wrapper) ---
    xb = jax.random.normal(ks[6], (64, 32), dtype=jnp.float32).astype(jnp.bfloat16)
    tb = jax.random.normal(ks[7], (64, 32), dtype=jnp.float32)
    out = loss_flood(xb, tb, flood_level=fl, loss_name="L1Loss")
    jax.block_until_ready(out)
    ref = _l1_ref(xb, tb.astype(jnp.bfloat16), fl)
    np.testing.assert_allclose(np.asarray(out), np.asarray(ref),
                               rtol=1e-4, atol=1e-4)

    print("KERNEL_OK")
</pallas_src>

<mosaic_0001>
module attributes {stable_mosaic.version = 11 : i64} {
  func.func @_ce_partial_kernel(%arg0: i32, %arg1: memref<16x32xf32, #tpu.memory_space<vmem>>, %arg2: memref<16x1xi32, #tpu.memory_space<vmem>>, %arg3: memref<1x8x128xf32, #tpu.memory_space<vmem>>) attributes {dimension_semantics = [#tpu.dimension_semantics<parallel>], iteration_bounds = array<i64: 3>, scalar_prefetch = 0 : i64, scratch_operands = 0 : i64, tpu.core_type = #tpu.core_type<tc>, window_params = [{transform_indices = @transform_0, window_bounds = array<i64: 16, 32>}, {transform_indices = @transform_1, window_bounds = array<i64: 16, 1>}, {transform_indices = @transform_2, window_bounds = array<i64: 1, 8, 128>}]} {
    %c0 = arith.constant 0 : index
    %c0_0 = arith.constant 0 : index
    %0 = vector.load %arg1[%c0, %c0_0] : memref<16x32xf32, #tpu.memory_space<vmem>>, vector<16x32xf32>
    %c0_1 = arith.constant 0 : index
    %c0_2 = arith.constant 0 : index
    %1 = vector.load %arg2[%c0_1, %c0_2] : memref<16x1xi32, #tpu.memory_space<vmem>>, vector<16x1xi32>
    %cst = arith.constant dense<0xFF800000> : vector<16xf32>
    %2 = vector.multi_reduction <maximumf>, %0, %cst [1] : vector<16x32xf32> to vector<16xf32>
    %3 = vector.shape_cast %2 : vector<16xf32> to vector<16x1xf32>
    %4 = vector.broadcast %3 : vector<16x1xf32> to vector<16x32xf32>
    %5 = arith.subf %0, %4 : vector<16x32xf32>
    %6 = math.exp %5 : vector<16x32xf32>
    %cst_3 = arith.constant dense<0.000000e+00> : vector<16xf32>
    %7 = vector.multi_reduction <add>, %6, %cst_3 [1] : vector<16x32xf32> to vector<16xf32>
    %8 = vector.shape_cast %7 : vector<16xf32> to vector<16x1xf32>
    %9 = math.log %8 : vector<16x1xf32>
    %10 = arith.addf %3, %9 : vector<16x1xf32>
    %11 = tpu.iota {dimensions = array<i32: 1>} : vector<16x32xi32>
    %12 = vector.broadcast %1 : vector<16x1xi32> to vector<16x32xi32>
    %13 = arith.cmpi eq, %11, %12 : vector<16x32xi32>
    %cst_4 = arith.constant 0.000000e+00 : f32
    %14 = vector.broadcast %cst_4 : f32 to vector<16x32xf32>
    %15 = arith.select %13, %0, %14 : vector<16x32xi1>, vector<16x32xf32>
    %cst_5 = arith.constant dense<0.000000e+00> : vector<16xf32>
    %16 = vector.multi_reduction <add>, %15, %cst_5 [1] : vector<16x32xf32> to vector<16xf32>
    %17 = vector.shape_cast %16 : vector<16xf32> to vector<16x1xf32>
    %18 = arith.subf %10, %17 : vector<16x1xf32>
    %c16_i32 = arith.constant 16 : i32
    %19 = arith.muli %arg0, %c16_i32 : i32
    %20 = tpu.iota {dimensions = array<i32: 0>} : vector<16x1xi32>
    %21 = vector.broadcast %19 : i32 to vector<16x1xi32>
    %22 = arith.addi %21, %20 : vector<16x1xi32>
    %c40_i32 = arith.constant 40 : i32
    %23 = vector.broadcast %c40_i32 : i32 to vector<16x1xi32>
    %24 = arith.cmpi slt, %22, %23 : vector<16x1xi32>
    %cst_6 = arith.constant 0.000000e+00 : f32
    %25 = vector.broadcast %cst_6 : f32 to vector<16x1xf32>
    %26 = arith.select %24, %18, %25 : vector<16x1xi1>, vector<16x1xf32>
    %27 = vector.shape_cast %26 : vector<16x1xf32> to vector<1x16x1xf32>
    %cst_7 = arith.constant dense<0.000000e+00> : vector<1xf32>
    %28 = vector.multi_reduction <add>, %27, %cst_7 [1, 2] : vector<1x16x1xf32> to vector<1xf32>
    %29 = vector.shape_cast %28 : vector<1xf32> to vector<1x1x1xf32>
    %30 = vector.extract %29[0, 0, 0] : f32 from vector<1x1x1xf32>
    %31 = tpu.iota {dimensions = array<i32: 0>} : vector<8x128xi32>
    %32 = tpu.iota {dimensions = array<i32: 1>} : vector<8x128xi32>
    %c0_i32 = arith.constant 0 : i32
    %33 = vector.broadcast %c0_i32 : i32 to vector<8x128xi32>
    %34 = arith.cmpi eq, %31, %33 : vector<8x128xi32>
    %c0_i32_8 = arith.constant 0 : i32
    %35 = vector.broadcast %c0_i32_8 : i32 to vector<8x128xi32>
    %36 = arith.cmpi eq, %32, %35 : vector<8x128xi32>
    %37 = arith.andi %34, %36 : vector<8x128xi1>
    %cst_9 = arith.constant 0.000000e+00 : f32
    %38 = vector.broadcast %30 : f32 to vector<8x128xf32>
    %39 = vector.broadcast %cst_9 : f32 to vector<8x128xf32>
    %40 = arith.select %37, %38, %39 : vector<8x128xi1>, vector<8x128xf32>
    %41 = vector.shape_cast %40 : vector<8x128xf32> to vector<1x8x128xf32>
    %c0_10 = arith.constant 0 : index
    %c0_11 = arith.constant 0 : index
    %c0_12 = arith.constant 0 : index
    %42 = vector.load %arg3[%c0_10, %c0_11, %c0_12] : memref<1x8x128xf32, #tpu.memory_space<vmem>>, vector<1x8x128xf32>
    tpu.vector_store %arg3[%c0_10, %c0_11, %c0_12], %41 {strides = array<i32>} : memref<1x8x128xf32, #tpu.memory_space<vmem>>, vector<1x8x128xf32>,
    return
  }
  func.func @transform_0(%arg0: i32) -> (i32, i32) {
    %c0_i32 = arith.constant 0 : i32
    %c0_i32_0 = arith.constant 0 : i32
    return %arg0, %c0_i32 : i32, i32
  }
  func.func @transform_1(%arg0: i32) -> (i32, i32) {
    %c0_i32 = arith.constant 0 : i32
    %c0_i32_0 = arith.constant 0 : i32
    return %arg0, %c0_i32 : i32, i32
  }
  func.func @transform_2(%arg0: i32) -> (i32, i32, i32) {
    %c0_i32 = arith.constant 0 : i32
    %c0_i32_0 = arith.constant 0 : i32
    %c0_i32_1 = arith.constant 0 : i32
    return %arg0, %c0_i32, %c0_i32_0 : i32, i32, i32
  }
}

</mosaic_0001>

<llo_original>
// kernel: tpu_custom_call.1
$region0: #{tpu_custom_call.1}
  #allocation0 [shape = 'u32[]', space=smem, size = 0x4, offset = 0x4, fixed_abs, tag = 'smem constant byte address 0x4 - core index']
  #allocation1 [shape = 'u32[72,128]{1,0:T(1,128)}', space=vmem, size = 0x9000, scoped, tag = 'internal scratch']
  %s0 = inlined_call_operand.vmem [shape: f32[40,32], index: 0, kind: input, shape index: {}]
  %s1 = inlined_call_operand.vmem [shape: s32[40,1], index: 1, kind: input, shape index: {}]
  %s2 = inlined_call_operand.hbm [shape: f32[3,8,128], index: 2, kind: output, shape index: {}]
  %s3 = sld [smem:[#allocation0]]
  $region41: #{tpu_custom_call.1} parent=0
    _
  %s5 = ssub.s32 1, %s3
  %s6 = scalar_select 0, %s5, %s3
  $region1: #{tpu_custom_call.1} parent=0
    #allocation2 [shape = 'u8[8192]{0}', space=vmem, size = 0x2000, scoped, tag = 'output window, operand 0']
    #allocation3 [shape = 's32[2]{0}', space=sflag, size = 0x8, scoped, tag = 'scoped memory for tpu_custom_call.1']
    %7 = vsyncpa [#allocation3], 0
    %s8 = scalar_lea.sflag [#allocation3], 1
    %9 = vsyncpa %s8, 0
    loop: start=0, step=1, limit=5
    $region2: #{tpu_custom_call.1} parent=1 // loop_pre_header
      _
    $region3: #{tpu_custom_call.1} parent=1 // loop_header
      %s11 = sphi 0, %s15
      %p12 = scmp.ge.s32.totalorder %s11, 5
      %s21 = sphi 0, %s23
      %s24 = sphi 0, %s21
      %s25 = sphi 0, %s24
      %s41 = sphi 0, %s25
      %s47 = sphi 0, %s49
      %s50 = sphi 0, %s47
      %s51 = sphi 0, %s50
      %s67 = sphi 0, %s51
      %s73 = sphi 0, %s75
      %s76 = sphi 0, %s73
      %s77 = sphi 0, %s76
      %s93 = sphi 0, %s77
    $region4: #{tpu_custom_call.1} parent=1 // loop_header_branch
      %14 = sbr.rel (%p12) target = $region8
    $region5: #{tpu_custom_call.1} parent=1 // loop_body
      %s16 = ssub.s32 %s11, 1
      %s17 = ssub.s32 %s11, 2
      %s18 = sadd.s32 %s11, 1
      %s19 = ssub.s32 %s11, %s18
      %p20 = scmp.eq.s32.totalorder %s19, 0
      %s22 = sadd.s32 %s21, 1
      %s23 = scalar_select %p20, %s21, %s22
      %p26 = pneg %p20
      %p27 = scmp.eq.s32.totalorder %s11, 2
      %p28 = por %p26, %p27
      %p29 = scmp.ne.s32.totalorder %s21, %s24
      %p30 = scmp.eq.s32.totalorder %s11, 0
      %p31 = por %p29, %p30
      %p32 = scmp.ne.s32.totalorder %s21, %s24
      %p33 = scmp.eq.s32.totalorder %s16, 2
      %p34 = por %p32, %p33
      %p35 = scmp.ne.s32.totalorder %s24, %s25
      %p36 = scmp.eq.s32.totalorder %s16, 0
      %p37 = por %p35, %p36
      %p38 = scmp.ne.s32.totalorder %s24, %s25
      %p39 = scmp.eq.s32.totalorder %s17, 2
      %p40 = por %p38, %p39
      %p42 = scmp.ne.s32.totalorder %s25, %s41
      %p43 = scmp.eq.s32.totalorder %s17, 0
      %p44 = por %p42, %p43
      %s45 = ssub.s32 %s11, %s18
      %p46 = scmp.eq.s32.totalorder %s45, 0
      %s48 = sadd.s32 %s47, 1
      %s49 = scalar_select %p46, %s47, %s48
      %p52 = pneg %p46
      %p53 = scmp.eq.s32.totalorder %s11, 2
      %p54 = por %p52, %p53
      %p55 = scmp.ne.s32.totalorder %s47, %s50
      %p56 = scmp.eq.s32.totalorder %s11, 0
      %p57 = por %p55, %p56
      %p58 = scmp.ne.s32.totalorder %s47, %s50
      %p59 = scmp.eq.s32.totalorder %s16, 2
      %p60 = por %p58, %p59
      %p61 = scmp.ne.s32.totalorder %s50, %s51
      %p62 = scmp.eq.s32.totalorder %s16, 0
      %p63 = por %p61, %p62
      %p64 = scmp.ne.s32.totalorder %s50, %s51
      %p65 = scmp.eq.s32.totalorder %s17, 2
      %p66 = por %p64, %p65
      %p68 = scmp.ne.s32.totalorder %s51, %s67
      %p69 = scmp.eq.s32.totalorder %s17, 0
      %p70 = por %p68, %p69
      %s71 = ssub.s32 %s11, %s18
      %p72 = scmp.eq.s32.totalorder %s71, 0
      %s74 = sadd.s32 %s73, 1
      %s75 = scalar_select %p72, %s73, %s74
      %p78 = pneg %p72
      %p79 = scmp.eq.s32.totalorder %s11, 2
      %p80 = por %p78, %p79
      %p81 = scmp.ne.s32.totalorder %s73, %s76
      %p82 = scmp.eq.s32.totalorder %s11, 0
      %p83 = por %p81, %p82
      %p84 = scmp.ne.s32.totalorder %s73, %s76
      %p85 = scmp.eq.s32.totalorder %s16, 2
      %p86 = por %p84, %p85
      %p87 = scmp.ne.s32.totalorder %s76, %s77
      %p88 = scmp.eq.s32.totalorder %s16, 0
      %p89 = por %p87, %p88
      %p90 = scmp.ne.s32.totalorder %s76, %s77
      %p91 = scmp.eq.s32.totalorder %s17, 2
      %p92 = por %p90, %p91
      %p94 = scmp.ne.s32.totalorder %s77, %s93
      %p95 = scmp.eq.s32.totalorder %s17, 0
      %p96 = por %p94, %p95
      %p97 = scmp.le.s32.totalorder 1, %s11
      %p98 = scmp.lt.s32.totalorder %s11, 4
      %p99 = pnand %p97, %p98
      %p100 = pneg %p99
      // Predicated region
      $region9: #{tpu_custom_call.1} parent=5 // pred_check
        _
      $region10: #{tpu_custom_call.1} parent=5 // pred_check_branch
        %102 = sbr.rel (%p99) target = $region12
      $region11: #{tpu_custom_call.1} parent=5 // pred_region
        %s103 = ssub.s32 %s11, 1
      $region12: #{tpu_custom_call.1} parent=5 // pred_fallthru
        _
      %p104 = scmp.lt.s32.totalorder %s11, 3
      // Predicated region
      $region13: #{tpu_custom_call.1} parent=5 // pred_check
        %p105 = pneg %p104
      $region14: #{tpu_custom_call.1} parent=5 // pred_check_branch
        %107 = sbr.rel (%p105) target = $region16
      $region15: #{tpu_custom_call.1} parent=5 // pred_region
        // Predicated region
        $region17: #{tpu_custom_call.1} parent=15 // pred_check
          %p108 = pneg %p31
        $region18: #{tpu_custom_call.1} parent=15 // pred_check_branch
          %110 = sbr.rel (%p108) target = $region20
        $region19: #{tpu_custom_call.1} parent=15 // pred_region
          %s111 = smul.u32 2, %s11
          %s112 = ssub.s32 5, %s111
          %p113 = scmp.lt.s32.totalorder %s112, 2
          %s114 = scalar_select %p113, %s112, 2
          %s115 = smul.u32 8, %s114
          %p116 = scmp.lt.s32.totalorder %s111, 4
          %s117 = scalar_select %p116, %s111, 4
          %s118 = smul.addr %s117, 8
          %s119 = scalar_lea.vmem %s0, %s118
          %s120 = smul.u32 2, %s11
          %s121 = ssub.s32 5, %s120
          %p122 = scmp.lt.s32.totalorder %s121, 2
          %s123 = scalar_select %p122, %s121, 2
          %s124 = smul.u32 8, %s123
        $region20: #{tpu_custom_call.1} parent=15 // pred_fallthru
          _
        // Predicated region
        $region21: #{tpu_custom_call.1} parent=15 // pred_check
          %p125 = pneg %p57
        $region22: #{tpu_custom_call.1} parent=15 // pred_check_branch
          %127 = sbr.rel (%p125) target = $region24
        $region23: #{tpu_custom_call.1} parent=15 // pred_region
          %s128 = smul.u32 2, %s11
          %s129 = ssub.s32 5, %s128
          %p130 = scmp.lt.s32.totalorder %s129, 2
          %s131 = scalar_select %p130, %s129, 2
          %s132 = smul.u32 8, %s131
          %p133 = scmp.lt.s32.totalorder %s128, 4
          %s134 = scalar_select %p133, %s128, 4
          %s135 = smul.addr %s134, 8
          %s136 = scalar_lea.vmem %s1, %s135
          %s137 = smul.u32 2, %s11
          %s138 = ssub.s32 5, %s137
          %p139 = scmp.lt.s32.totalorder %s138, 2
          %s140 = scalar_select %p139, %s138, 2
          %s141 = smul.u32 8, %s140
        $region24: #{tpu_custom_call.1} parent=15 // pred_fallthru
          _
      $region16: #{tpu_custom_call.1} parent=5 // pred_fallthru
        _
      %p142 = scmp.le.s32.totalorder 1, %s11
      %p143 = scmp.lt.s32.totalorder %s11, 4
      %p144 = pnand %p142, %p143
      %p145 = pneg %p144
      // Predicated region
      $region25: #{tpu_custom_call.1} parent=5 // pred_check
        _
      $region26: #{tpu_custom_call.1} parent=5 // pred_check_branch
        %147 = sbr.rel (%p144) target = $region28
      $region27: #{tpu_custom_call.1} parent=5 // pred_region
        %s148 = ssub.s32 %s11, 1
        %s149 = smul.u32 2, %s16
        %s150 = ssub.s32 5, %s149
        %p151 = scmp.lt.s32.totalorder %s150, 2
        %s152 = scalar_select %p151, %s150, 2
        %s153 = smul.u32 8, %s152
        %p154 = scmp.lt.s32.totalorder %s149, 4
        %s155 = scalar_select %p154, %s149, 4
        %s156 = smul.addr %s155, 8
        %s157 = scalar_lea.vmem %s0, %s156
        %p158 = pneg %p37
        %p159 = pneg %p34
        %s160 = smul.u32 2, %s16
        %s161 = ssub.s32 5, %s160
        %p162 = scmp.lt.s32.totalorder %s161, 2
        %s163 = scalar_select %p162, %s161, 2
        %s164 = smul.u32 8, %s163
        %p165 = scmp.lt.s32.totalorder %s160, 4
        %s166 = scalar_select %p165, %s160, 4
        %s167 = smul.addr %s166, 8
        %s168 = scalar_lea.vmem %s1, %s167
        %p169 = pneg %p63
        %p170 = pneg %p60
        %p171 = pneg %p89
        %p172 = pneg %p86
        %s173 = sand.u32 %s76, 1
        %s174 = scalar_lea.sflag [#allocation3], %s173
        %s175 = sand.u32 %s76, 1
        %s176 = smul.addr %s175, 8
        %s177 = scalar_lea.vmem [#allocation2], %s176
        %s178 = smul.u32 2, %s16
        %s179 = ssub.s32 5, %s178
        %p180 = scmp.lt.s32.totalorder %s179, 2
        %s181 = scalar_select %p180, %s179, 2
        %s182 = smul.u32 8, %s181
        %p183 = scmp.lt.s32.totalorder %s178, 4
        %s184 = scalar_select %p183, %s178, 4
        %s185 = smul.addr %s184, 8
        %s186 = scalar_lea.vmem %s0, %s185
        %s187 = smul.u32 2, %s16
        %s188 = ssub.s32 5, %s187
        %p189 = scmp.lt.s32.totalorder %s188, 2
        %s190 = scalar_select %p189, %s188, 2
        %s191 = smul.u32 8, %s190
        %s192 = smul.u32 2, %s16
        %s193 = ssub.s32 5, %s192
        %p194 = scmp.lt.s32.totalorder %s193, 2
        %s195 = scalar_select %p194, %s193, 2
        %s196 = smul.u32 8, %s195
        %p197 = scmp.lt.s32.totalorder %s192, 4
        %s198 = scalar_select %p197, %s192, 4
        %s199 = smul.addr %s198, 8
        %s200 = scalar_lea.vmem %s1, %s199
        %s201 = smul.u32 2, %s16
        %s202 = ssub.s32 5, %s201
        %p203 = scmp.lt.s32.totalorder %s202, 2
        %s204 = scalar_select %p203, %s202, 2
        %s205 = smul.u32 8, %s204
        %v206 = vld [vmem:[%s186] sm:$0xff]
        %v207 = vld [vmem:[%s186 + $0x8] sm:$0xff]
        %v208 = vld [vmem:[%s200] sm:$0xff]
        %v209 = vld [vmem:[%s200 + $0x8] sm:$0xff]
        %vm210 = vcmask 261120
        %v211 = vsel %vm210, %v206, -inf
        %212 = vmax.xlane.f32.xlu0 %v211
        %v213 = vpop.xlane.xlu0 %212
        %v214 = vsel %vm210, %v207, -inf
        %215 = vmax.xlane.f32.xlu0 %v214
        %v216 = vpop.xlane.xlu0 %215
        %v217 = vsub.f32 %v206, %v213
        %v218 = vsub.f32 %v207, %v216
        %v219 = vmul.f32 %v217, 1.442695
        %v220 = vpow.pop %v219
        %v221 = vmul.f32 %v218, 1.442695
        %v222 = vpow.pop %v221
        %v223 = vsel %vm210, %v220, 0.0
        %224 = vadd.xlane.f32.xlu0 %v223
        %v225 = vpop.xlane.xlu0 %224
        %v226 = vsel %vm210, %v222, 0.0
        %227 = vadd.xlane.f32.xlu0 %v226
        %v228 = vpop.xlane.xlu0 %227
        %v229 = vlog2.pop %v225
        %v230 = vmul.f32 %v229, 0.6931472
        %v231 = vlog2.pop %v228
        %v232 = vmul.f32 %v231, 0.6931472
        %v233 = vadd.f32 %v213, %v230
        %v234 = vadd.f32 %v216, %v232
        %v235 = vlaneseq
        %v236 = vand.u32 %v235, 127
        %237 = vset.pattern.permute.xlu0 0
        %238 = vperm.xlu0 %237, %v208
        %v239 = vpop.permute.xlu0 %238
        %240 = vset.pattern.permute.xlu0 0
        %241 = vperm.xlu0 %240, %v209
        %v242 = vpop.permute.xlu0 %241
        %vm243 = vcmp.eq.s32.totalorder %v236, %v239
        %vm244 = vcmp.eq.s32.totalorder %v236, %v242
        %v245 = vsel %vm243, %v206, 0.0
        %v246 = vsel %vm244, %v207, 0.0
        %v247 = vsel %vm210, %v245, 0.0
        %248 = vadd.xlane.f32.xlu0 %v247
        %v249 = vpop.xlane.xlu0 %248
        %v250 = vsel %vm210, %v246, 0.0
        %251 = vadd.xlane.f32.xlu0 %v250
        %v252 = vpop.xlane.xlu0 %251
        %v253 = vsub.f32 %v233, %v249
        %v254 = vsub.f32 %v234, %v252
        %s255 = smul.u32 %s16, 16
        %v256 = vlaneseq
        %v257 = vshrl.u32 %v256, 7
        %v258 = vadd.s32 %v257, 8
        %v259 = vstv %s255
        %v260 = vadd.s32 %v259, %v257
        %v261 = vadd.s32 %v259, %v258
        %vm262 = vcmp.lt.s32.totalorder %v260, 40
        %vm263 = vcmp.lt.s32.totalorder %v261, 40
        %v264 = vsel %vm262, %v253, 0.0
        %v265 = vsel %vm263, %v254, 0.0
        %vm266 = vcmask 7168
        %v267 = vsel %vm266, %v264, 0.0
        %v268 = vsel %vm266, %v265, 0.0
        %v269 = vadd.f32 %v267, %v268
        %270 = vadd.xlane.f32.xlu0 %v269
        %v271 = vpop.xlane.xlu0 %270
        %v272 = vrot.slane %v271, 4
        %v273 = vadd.f32 %v271, %v272
        %v274 = vrot.slane %v273, 2
        %v275 = vadd.f32 %v273, %v274
        %v276 = vrot.slane %v275, 1
        %v277 = vadd.f32 %v275, %v276
        %s278 = vtos %v277
        %vm279 = vcmp.eq.s32.totalorder %v257, 0
        %vm280 = vcmp.eq.s32.totalorder %v236, 0
        %vm281 = vmand %vm279, %vm280
        %v282 = vstv %s278
        %v283 = vsel %vm281, %v282, 0.0
        %284 = vst [vmem:[%s177] sm:$0xff] %v283
        %s285 = sand.u32 %s76, 1
        %s286 = scalar_lea.sflag [#allocation3], %s285
        %s287 = sand.u32 %s76, 1
        %s288 = smul.addr %s287, 8
        %s289 = scalar_lea.vmem [#allocation2], %s288
        // Predicated region
        $region29: #{tpu_custom_call.1} parent=27 // pred_check
          %p290 = pneg %p86
        $region30: #{tpu_custom_call.1} parent=27 // pred_check_branch
          %292 = sbr.rel (%p290) target = $region32
        $region31: #{tpu_custom_call.1} parent=27 // pred_region
          %294 = vsyncadd %s286, 0
          %s295 = smul.addr %s16, 8
          %s296 = scalar_lea.hbm %s2, %s295
          %s298 = sshll.u32 %s289, 4
          %s299 = int_to_ptr.vmem [resolvable:$true] %s298
          %s300 = sshll.u32 %s296, 4
          %s301 = int_to_ptr.hbm [resolvable:$true] %s300
          %303 = dma.vmem_to_hbm [thread:$0]  %s299, 128, %s301, %s286
        $region32: #{tpu_custom_call.1} parent=27 // pred_fallthru
          _
      $region28: #{tpu_custom_call.1} parent=5 // pred_fallthru
        _
      %p304 = scmp.le.s32.totalorder 2, %s11
      // Predicated region
      $region33: #{tpu_custom_call.1} parent=5 // pred_check
        %p305 = pneg %p304
      $region34: #{tpu_custom_call.1} parent=5 // pred_check_branch
        %307 = sbr.rel (%p305) target = $region36
      $region35: #{tpu_custom_call.1} parent=5 // pred_region
        %s308 = ssub.s32 %s11, 2
        // Predicated region
        $region37: #{tpu_custom_call.1} parent=35 // pred_check
          %p309 = pneg %p92
        $region38: #{tpu_custom_call.1} parent=35 // pred_check_branch
          %311 = sbr.rel (%p309) target = $region40
        $region39: #{tpu_custom_call.1} parent=35 // pred_region
          %s312 = sand.u32 %s77, 1
          %s313 = scalar_lea.sflag [#allocation3], %s312
          %s314 = sand.u32 %s77, 1
          %s315 = smul.addr %s314, 8
          %s316 = scalar_lea.vmem [#allocation2], %s315
          %318 = dma.done %s313, 128
        $region40: #{tpu_custom_call.1} parent=35 // pred_fallthru
          _
      $region36: #{tpu_custom_call.1} parent=5 // pred_fallthru
        _
    $region6: #{tpu_custom_call.1} parent=1 // loop_footer
      %s15 = sadd.s32 1, %s11
    $region7: #{tpu_custom_call.1} parent=1 // loop_footer_branch
      %10 = sbr.rel target = $region3
    $region8: #{tpu_custom_call.1} parent=1 // loop_exit
      _
    %319 = vsyncpa [#allocation3], 1
    %s320 = scalar_lea.sflag [#allocation3], 1
    %321 = vsyncpa %s320, 1

</llo_original>
